<compile_context>
chip_gen: v7x
topology: tpu7x:2x2x1
jax: 0.10.0
libtpu: 0.0.40
codegen_flags: <defaults>
</compile_context>

<pallas_src>
import functools

import jax
import jax.numpy as jnp
from jax.experimental import pallas as pl
from jax.experimental.pallas import tpu as pltpu


_PAD = 128  # zero halo (in lanes) on each side of the flattened H*W axis


def _dnn_kernel(x_ref, *refs, H, W):
    """One grid step = one batch element; all stages computed in-VMEM.

    x_ref        : (1, Cin0, H*W)      input, channels on sublanes, H*W on lanes
    refs[2i]     : (Cout_i, 9*Cin_i)   folded stage-i weight matrix (VMEM)
    refs[2i+1]   : (Cout_i, 1)         folded stage-i bias (VMEM)
    refs[-3]     : (1, Cout_last, H*W) output
    refs[-2]     : (Cmax, 2*_PAD+H*W)  padded activation scratch (VMEM)
    refs[-1]     : (9*Cmax, H*W)       im2col patches scratch (VMEM)
    """
    n_stage = (len(refs) - 3) // 2
    w_refs = [refs[2 * i] for i in range(n_stage)]
    b_refs = [refs[2 * i + 1] for i in range(n_stage)]
    o_ref = refs[2 * n_stage]
    xp_ref = refs[2 * n_stage + 1]
    patches_ref = refs[2 * n_stage + 2]

    HW = H * W
    cin0 = x_ref.shape[1]

    # Column-wrap masks (the lane halo handles top/bottom rows; only left/right
    # column shifts can wrap across a row boundary).  Hoisted out of the loops.
    col = jax.lax.broadcasted_iota(jnp.int32, (1, HW), 1)
    if (W & (W - 1)) == 0:
        col_mod = jnp.bitwise_and(col, W - 1)
    else:
        col_mod = jax.lax.rem(col, W)
    mask_left = col_mod > 0          # valid lanes for dx == -1
    mask_right = col_mod < (W - 1)   # valid lanes for dx == +1

    # Zero the padded activation scratch (halo stays zero for every stage),
    # then drop this batch element into the interior.
    xp_ref[...] = jnp.zeros(xp_ref.shape, xp_ref.dtype)
    xp_ref[0:cin0, _PAD:_PAD + HW] = x_ref[0].astype(jnp.float32)

    for s in range(n_stage):
        cout_s = w_refs[s].shape[0]
        cin_s = w_refs[s].shape[1] // 9

        # Build im2col patches (9*Cin, H*W) from shifted slices of the padded
        # activation.  Tap order t = ky*3 + kx matches the weight layout.
        for ky in range(3):
            for kx in range(3):
                t = ky * 3 + kx
                dy, dx = ky - 1, kx - 1
                start = _PAD + dy * W + dx
                cand = xp_ref[0:cin_s, start:start + HW]
                if dx == -1:
                    cand = jnp.where(mask_left, cand, 0.0)
                elif dx == 1:
                    cand = jnp.where(mask_right, cand, 0.0)
                patches_ref[t * cin_s:(t + 1) * cin_s, :] = cand

        # One fused MXU matmul per stage: (Cout, 9*Cin) @ (9*Cin, H*W).
        out = jnp.dot(w_refs[s][...], patches_ref[0:9 * cin_s, :],
                      preferred_element_type=jnp.float32)
        out = out + b_refs[s][...]           # (Cout, 1) broadcasts along lanes

        if s == n_stage - 1:
            o_ref[0] = out.astype(o_ref.dtype)
        else:
            # Keep the intermediate activation resident in VMEM for next stage.
            xp_ref[0:cout_s, _PAD:_PAD + HW] = out


def _fold_stage_params(w, b, channel_equal):
    """Fold all branches of one Multi_branch stage into a single conv.

    w : (branch, Csub, Cin, 3, 3)   PyTorch conv weight layout per branch
    b : (branch, Csub)
    returns wmat (Cout, 9*Cin) with row-major (ky, kx, ci) K ordering,
            bvec (Cout, 1)
    """
    if channel_equal:
        w_eff = jnp.concatenate([w[i] for i in range(w.shape[0])], axis=0)
        b_eff = jnp.concatenate([b[i] for i in range(b.shape[0])], axis=0)
    else:
        w_eff = jnp.sum(w, axis=0)
        b_eff = jnp.sum(b, axis=0)
    cout, cin = w_eff.shape[0], w_eff.shape[1]
    wmat = jnp.transpose(w_eff, (0, 2, 3, 1)).reshape(cout, 9 * cin)
    return wmat, b_eff.reshape(cout, 1)


def dnn_forward(x_nchw, params, *, channel_equal):
    """Full dnn forward: NCHW in, NCHW out (PyTorch convention)."""
    N, Cin0, H, W = x_nchw.shape
    HW = H * W
    assert W + 1 <= _PAD, "lane halo too small for this width"
    x_flat = x_nchw.reshape(N, Cin0, HW)

    w_list, b_list = [], []
    for (w, b) in params:
        wm, bm = _fold_stage_params(w, b, channel_equal)
        w_list.append(wm)
        b_list.append(bm)

    cout_last = w_list[-1].shape[0]
    cmax = max([Cin0] + [wm.shape[0] for wm in w_list]
               + [wm.shape[1] // 9 for wm in w_list])

    in_specs = [pl.BlockSpec((1, Cin0, HW), lambda n: (n, 0, 0))]
    operands = [x_flat]
    for wm, bm in zip(w_list, b_list):
        co, k = wm.shape
        in_specs.append(pl.BlockSpec((co, k), lambda n: (0, 0)))
        in_specs.append(pl.BlockSpec((co, 1), lambda n: (0, 0)))
        operands.extend([wm, bm])

    kernel = functools.partial(_dnn_kernel, H=H, W=W)

    out = pl.pallas_call(
        kernel,
        out_shape=jax.ShapeDtypeStruct((N, cout_last, HW), x_nchw.dtype),
        grid_spec=pltpu.PrefetchScalarGridSpec(
            num_scalar_prefetch=0,
            grid=(N,),
            in_specs=in_specs,
            out_specs=pl.BlockSpec((1, cout_last, HW), lambda n: (n, 0, 0)),
            scratch_shapes=[
                pltpu.VMEM((cmax, 2 * _PAD + HW), jnp.float32),   # padded act
                pltpu.VMEM((9 * cmax, HW), jnp.float32),          # im2col
            ]),
        compiler_params=pltpu.CompilerParams(
            dimension_semantics=("parallel",),
            vmem_limit_bytes=16 * 1024 * 1024),
    )(*operands)

    return out.reshape(N, cout_last, H, W)


def init_dnn_params(key, in_channel, out_channel, block_num, branch,
                    channel_equal):
    """Deterministic params matching the PyTorch module's per-branch layout:
    w: (branch, Csub, Cin, 3, 3), b: (branch, Csub) per stage."""
    sub_channel = out_channel // branch if channel_equal else out_channel
    params = []
    for _ in range(block_num):
        key, kw, kb = jax.random.split(key, 3)
        fan_in = in_channel * 9
        bound = (1.0 / fan_in) ** 0.5
        w = jax.random.uniform(
            kw, (branch, sub_channel, in_channel, 3, 3),
            minval=-bound, maxval=bound, dtype=jnp.float32)
        b = jax.random.uniform(
            kb, (branch, sub_channel),
            minval=-bound, maxval=bound, dtype=jnp.float32)
        params.append((w, b))
        # PyTorch module builds every stage with the same in_channel.
    return params


def _reference_dnn(x_nchw, params, *, channel_equal):
    """Pure-JAX reference (lax conv, per-branch) for a sanity check."""
    dn = ("NCHW", "OIHW", "NCHW")
    out = x_nchw
    for (w, b) in params:
        branch = w.shape[0]
        outs = []
        for bi in range(branch):
            o = jax.lax.conv_general_dilated(
                out, w[bi], window_strides=(1, 1),
                padding=((1, 1), (1, 1)),
                dimension_numbers=dn) + b[bi][None, :, None, None]
            outs.append(o)
        out = jnp.concatenate(outs, axis=1) if channel_equal else sum(outs)
    return out


if __name__ == "__main__":
    # dnn(in_channel=4, out_channel=4, block_num=2, branch=2, ...)
    N, C, H, W = 2, 4, 16, 16
    block_num, branch = 2, 2

    key = jax.random.PRNGKey(0)
    key, kx = jax.random.split(key)
    x = jax.random.normal(kx, (N, C, H, W), dtype=jnp.float32)

    for channel_equal in (False, True):
        params = init_dnn_params(key, in_channel=C, out_channel=C,
                                 block_num=block_num, branch=branch,
                                 channel_equal=channel_equal)
        out = dnn_forward(x, params, channel_equal=channel_equal)
        out = jax.block_until_ready(out)
        ref = _reference_dnn(x, params, channel_equal=channel_equal)
        assert out.shape == (N, C, H, W), out.shape
        assert jnp.allclose(out, ref, atol=1e-4, rtol=1e-4), \
            float(jnp.max(jnp.abs(out - ref)))

    # TODO(synk): `with_shuffle` flag exists in the PyTorch ctor but is unused
    # in its forward(), so nothing is translated for it.
    print("KERNEL_OK")
</pallas_src>

<mosaic_0001>
module attributes {stable_mosaic.version = 11 : i64} {
  func.func @_dnn_kernel(%arg0: i32, %arg1: memref<1x4x256xf32, #tpu.memory_space<vmem>>, %arg2: memref<4x36xf32, #tpu.memory_space<vmem>>, %arg3: memref<4x1xf32, #tpu.memory_space<vmem>>, %arg4: memref<4x36xf32, #tpu.memory_space<vmem>>, %arg5: memref<4x1xf32, #tpu.memory_space<vmem>>, %arg6: memref<1x4x256xf32, #tpu.memory_space<vmem>>, %arg7: memref<4x512xf32, #tpu.memory_space<vmem>>, %arg8: memref<36x256xf32, #tpu.memory_space<vmem>>) attributes {dimension_semantics = [#tpu.dimension_semantics<parallel>], iteration_bounds = array<i64: 2>, scalar_prefetch = 0 : i64, scratch_operands = 2 : i64, tpu.core_type = #tpu.core_type<tc>, window_params = [{transform_indices = @transform_0, window_bounds = array<i64: 1, 4, 256>}, {pipeline_mode = #tpu.pipeline_mode<synchronous>, transform_indices = @transform_1, window_bounds = array<i64: 4, 36>}, {pipeline_mode = #tpu.pipeline_mode<synchronous>, transform_indices = @transform_2, window_bounds = array<i64: 4, 1>}, {pipeline_mode = #tpu.pipeline_mode<synchronous>, transform_indices = @transform_3, window_bounds = array<i64: 4, 36>}, {pipeline_mode = #tpu.pipeline_mode<synchronous>, transform_indices = @transform_4, window_bounds = array<i64: 4, 1>}, {transform_indices = @transform_5, window_bounds = array<i64: 1, 4, 256>}]} {
    %0 = tpu.iota {dimensions = array<i32: 1>} : vector<1x256xi32>
    %c15_i32 = arith.constant 15 : i32
    %1 = vector.broadcast %c15_i32 : i32 to vector<1x256xi32>
    %2 = arith.andi %0, %1 : vector<1x256xi32>
    %c0_i32 = arith.constant 0 : i32
    %3 = vector.broadcast %c0_i32 : i32 to vector<1x256xi32>
    %4 = arith.cmpi sgt, %2, %3 : vector<1x256xi32>
    %c15_i32_0 = arith.constant 15 : i32
    %5 = vector.broadcast %c15_i32_0 : i32 to vector<1x256xi32>
    %6 = arith.cmpi slt, %2, %5 : vector<1x256xi32>
    %cst = arith.constant 0.000000e+00 : f32
    %7 = vector.broadcast %cst : f32 to vector<4x512xf32>
    %c0 = arith.constant 0 : index
    %c0_1 = arith.constant 0 : index
    %8 = vector.load %arg7[%c0, %c0_1] : memref<4x512xf32, #tpu.memory_space<vmem>>, vector<4x512xf32>
    tpu.vector_store %arg7[%c0, %c0_1], %7 {strides = array<i32>} : memref<4x512xf32, #tpu.memory_space<vmem>>, vector<4x512xf32>,
    %c0_2 = arith.constant 0 : index
    %c0_3 = arith.constant 0 : index
    %c0_4 = arith.constant 0 : index
    %9 = vector.load %arg1[%c0_2, %c0_3, %c0_4] : memref<1x4x256xf32, #tpu.memory_space<vmem>>, vector<1x4x256xf32>
    %10 = vector.shape_cast %9 : vector<1x4x256xf32> to vector<4x256xf32>
    %c0_5 = arith.constant 0 : index
    %c128 = arith.constant 128 : index
    %11 = vector.load %arg7[%c0_5, %c128] : memref<4x512xf32, #tpu.memory_space<vmem>>, vector<4x256xf32>
    tpu.vector_store %arg7[%c0_5, %c128], %10 {strides = array<i32>} : memref<4x512xf32, #tpu.memory_space<vmem>>, vector<4x256xf32>,
    %c0_6 = arith.constant 0 : index
    %c111 = arith.constant 111 : index
    %12 = vector.load %arg7[%c0_6, %c111] : memref<4x512xf32, #tpu.memory_space<vmem>>, vector<4x256xf32>
    %cst_7 = arith.constant 0.000000e+00 : f32
    %13 = vector.shape_cast %4 : vector<1x256xi1> to vector<1x256xi1>
    %14 = vector.broadcast %13 : vector<1x256xi1> to vector<4x256xi1>
    %15 = vector.broadcast %cst_7 : f32 to vector<4x256xf32>
    %16 = arith.select %14, %12, %15 : vector<4x256xi1>, vector<4x256xf32>
    %c0_8 = arith.constant 0 : index
    %c0_9 = arith.constant 0 : index
    %17 = vector.load %arg8[%c0_8, %c0_9] : memref<36x256xf32, #tpu.memory_space<vmem>>, vector<4x256xf32>
    tpu.vector_store %arg8[%c0_8, %c0_9], %16 {strides = array<i32>} : memref<36x256xf32, #tpu.memory_space<vmem>>, vector<4x256xf32>,
    %c0_10 = arith.constant 0 : index
    %c112 = arith.constant 112 : index
    %18 = vector.load %arg7[%c0_10, %c112] : memref<4x512xf32, #tpu.memory_space<vmem>>, vector<4x256xf32>
    %c4 = arith.constant 4 : index
    %c0_11 = arith.constant 0 : index
    %19 = vector.load %arg8[%c4, %c0_11] : memref<36x256xf32, #tpu.memory_space<vmem>>, vector<4x256xf32>
    tpu.vector_store %arg8[%c4, %c0_11], %18 {strides = array<i32>} : memref<36x256xf32, #tpu.memory_space<vmem>>, vector<4x256xf32>,
    %c0_12 = arith.constant 0 : index
    %c113 = arith.constant 113 : index
    %20 = vector.load %arg7[%c0_12, %c113] : memref<4x512xf32, #tpu.memory_space<vmem>>, vector<4x256xf32>
    %cst_13 = arith.constant 0.000000e+00 : f32
    %21 = vector.shape_cast %6 : vector<1x256xi1> to vector<1x256xi1>
    %22 = vector.broadcast %21 : vector<1x256xi1> to vector<4x256xi1>
    %23 = vector.broadcast %cst_13 : f32 to vector<4x256xf32>
    %24 = arith.select %22, %20, %23 : vector<4x256xi1>, vector<4x256xf32>
    %c8 = arith.constant 8 : index
    %c0_14 = arith.constant 0 : index
    %25 = vector.load %arg8[%c8, %c0_14] : memref<36x256xf32, #tpu.memory_space<vmem>>, vector<4x256xf32>
    tpu.vector_store %arg8[%c8, %c0_14], %24 {strides = array<i32>} : memref<36x256xf32, #tpu.memory_space<vmem>>, vector<4x256xf32>,
    %c0_15 = arith.constant 0 : index
    %c127 = arith.constant 127 : index
    %26 = vector.load %arg7[%c0_15, %c127] : memref<4x512xf32, #tpu.memory_space<vmem>>, vector<4x256xf32>
    %cst_16 = arith.constant 0.000000e+00 : f32
    %27 = vector.shape_cast %4 : vector<1x256xi1> to vector<1x256xi1>
    %28 = vector.broadcast %27 : vector<1x256xi1> to vector<4x256xi1>
    %29 = vector.broadcast %cst_16 : f32 to vector<4x256xf32>
    %30 = arith.select %28, %26, %29 : vector<4x256xi1>, vector<4x256xf32>
    %c12 = arith.constant 12 : index
    %c0_17 = arith.constant 0 : index
    %31 = vector.load %arg8[%c12, %c0_17] : memref<36x256xf32, #tpu.memory_space<vmem>>, vector<4x256xf32>
    tpu.vector_store %arg8[%c12, %c0_17], %30 {strides = array<i32>} : memref<36x256xf32, #tpu.memory_space<vmem>>, vector<4x256xf32>,
    %c0_18 = arith.constant 0 : index
    %c128_19 = arith.constant 128 : index
    %32 = vector.load %arg7[%c0_18, %c128_19] : memref<4x512xf32, #tpu.memory_space<vmem>>, vector<4x256xf32>
    %c16 = arith.constant 16 : index
    %c0_20 = arith.constant 0 : index
    %33 = vector.load %arg8[%c16, %c0_20] : memref<36x256xf32, #tpu.memory_space<vmem>>, vector<4x256xf32>
    tpu.vector_store %arg8[%c16, %c0_20], %32 {strides = array<i32>} : memref<36x256xf32, #tpu.memory_space<vmem>>, vector<4x256xf32>,
    %c0_21 = arith.constant 0 : index
    %c129 = arith.constant 129 : index
    %34 = vector.load %arg7[%c0_21, %c129] : memref<4x512xf32, #tpu.memory_space<vmem>>, vector<4x256xf32>
    %cst_22 = arith.constant 0.000000e+00 : f32
    %35 = vector.shape_cast %6 : vector<1x256xi1> to vector<1x256xi1>
    %36 = vector.broadcast %35 : vector<1x256xi1> to vector<4x256xi1>
    %37 = vector.broadcast %cst_22 : f32 to vector<4x256xf32>
    %38 = arith.select %36, %34, %37 : vector<4x256xi1>, vector<4x256xf32>
    %c20 = arith.constant 20 : index
    %c0_23 = arith.constant 0 : index
    %39 = vector.load %arg8[%c20, %c0_23] : memref<36x256xf32, #tpu.memory_space<vmem>>, vector<4x256xf32>
    tpu.vector_store %arg8[%c20, %c0_23], %38 {strides = array<i32>} : memref<36x256xf32, #tpu.memory_space<vmem>>, vector<4x256xf32>,
    %c0_24 = arith.constant 0 : index
    %c143 = arith.constant 143 : index
    %40 = vector.load %arg7[%c0_24, %c143] : memref<4x512xf32, #tpu.memory_space<vmem>>, vector<4x256xf32>
    %cst_25 = arith.constant 0.000000e+00 : f32
    %41 = vector.shape_cast %4 : vector<1x256xi1> to vector<1x256xi1>
    %42 = vector.broadcast %41 : vector<1x256xi1> to vector<4x256xi1>
    %43 = vector.broadcast %cst_25 : f32 to vector<4x256xf32>
    %44 = arith.select %42, %40, %43 : vector<4x256xi1>, vector<4x256xf32>
    %c24 = arith.constant 24 : index
    %c0_26 = arith.constant 0 : index
    %45 = vector.load %arg8[%c24, %c0_26] : memref<36x256xf32, #tpu.memory_space<vmem>>, vector<4x256xf32>
    tpu.vector_store %arg8[%c24, %c0_26], %44 {strides = array<i32>} : memref<36x256xf32, #tpu.memory_space<vmem>>, vector<4x256xf32>,
    %c0_27 = arith.constant 0 : index
    %c144 = arith.constant 144 : index
    %46 = vector.load %arg7[%c0_27, %c144] : memref<4x512xf32, #tpu.memory_space<vmem>>, vector<4x256xf32>
    %c28 = arith.constant 28 : index
    %c0_28 = arith.constant 0 : index
    %47 = vector.load %arg8[%c28, %c0_28] : memref<36x256xf32, #tpu.memory_space<vmem>>, vector<4x256xf32>
    tpu.vector_store %arg8[%c28, %c0_28], %46 {strides = array<i32>} : memref<36x256xf32, #tpu.memory_space<vmem>>, vector<4x256xf32>,
    %c0_29 = arith.constant 0 : index
    %c145 = arith.constant 145 : index
    %48 = vector.load %arg7[%c0_29, %c145] : memref<4x512xf32, #tpu.memory_space<vmem>>, vector<4x256xf32>
    %cst_30 = arith.constant 0.000000e+00 : f32
    %49 = vector.shape_cast %6 : vector<1x256xi1> to vector<1x256xi1>
    %50 = vector.broadcast %49 : vector<1x256xi1> to vector<4x256xi1>
    %51 = vector.broadcast %cst_30 : f32 to vector<4x256xf32>
    %52 = arith.select %50, %48, %51 : vector<4x256xi1>, vector<4x256xf32>
    %c32 = arith.constant 32 : index
    %c0_31 = arith.constant 0 : index
    %53 = vector.load %arg8[%c32, %c0_31] : memref<36x256xf32, #tpu.memory_space<vmem>>, vector<4x256xf32>
    tpu.vector_store %arg8[%c32, %c0_31], %52 {strides = array<i32>} : memref<36x256xf32, #tpu.memory_space<vmem>>, vector<4x256xf32>,
    %c0_32 = arith.constant 0 : index
    %c0_33 = arith.constant 0 : index
    %54 = vector.load %arg2[%c0_32, %c0_33] : memref<4x36xf32, #tpu.memory_space<vmem>>, vector<4x36xf32>
    %c0_34 = arith.constant 0 : index
    %c0_35 = arith.constant 0 : index
    %55 = vector.load %arg8[%c0_34, %c0_35] : memref<36x256xf32, #tpu.memory_space<vmem>>, vector<36x256xf32>
    %cst_36 = arith.constant dense<0.000000e+00> : vector<4x256xf32>
    %56 = tpu.matmul %54, %55, %cst_36 {dimension_numbers = #tpu.dot_dimension_numbers<[1], [0], [0], [1], [0, 0, 1, 1], [], []>} : vector<4x36xf32>, vector<36x256xf32>, vector<4x256xf32> -> vector<4x256xf32>
    %c0_37 = arith.constant 0 : index
    %c0_38 = arith.constant 0 : index
    %57 = vector.load %arg3[%c0_37, %c0_38] : memref<4x1xf32, #tpu.memory_space<vmem>>, vector<4x1xf32>
    %58 = vector.broadcast %57 : vector<4x1xf32> to vector<4x256xf32>
    %59 = arith.addf %56, %58 : vector<4x256xf32>
    %c0_39 = arith.constant 0 : index
    %c128_40 = arith.constant 128 : index
    %60 = vector.load %arg7[%c0_39, %c128_40] : memref<4x512xf32, #tpu.memory_space<vmem>>, vector<4x256xf32>
    tpu.vector_store %arg7[%c0_39, %c128_40], %59 {strides = array<i32>} : memref<4x512xf32, #tpu.memory_space<vmem>>, vector<4x256xf32>,
    %c0_41 = arith.constant 0 : index
    %c111_42 = arith.constant 111 : index
    %61 = vector.load %arg7[%c0_41, %c111_42] : memref<4x512xf32, #tpu.memory_space<vmem>>, vector<4x256xf32>
    %cst_43 = arith.constant 0.000000e+00 : f32
    %62 = vector.shape_cast %4 : vector<1x256xi1> to vector<1x256xi1>
    %63 = vector.broadcast %62 : vector<1x256xi1> to vector<4x256xi1>
    %64 = vector.broadcast %cst_43 : f32 to vector<4x256xf32>
    %65 = arith.select %63, %61, %64 : vector<4x256xi1>, vector<4x256xf32>
    %c0_44 = arith.constant 0 : index
    %c0_45 = arith.constant 0 : index
    %66 = vector.load %arg8[%c0_44, %c0_45] : memref<36x256xf32, #tpu.memory_space<vmem>>, vector<4x256xf32>
    tpu.vector_store %arg8[%c0_44, %c0_45], %65 {strides = array<i32>} : memref<36x256xf32, #tpu.memory_space<vmem>>, vector<4x256xf32>,
    %c0_46 = arith.constant 0 : index
    %c112_47 = arith.constant 112 : index
    %67 = vector.load %arg7[%c0_46, %c112_47] : memref<4x512xf32, #tpu.memory_space<vmem>>, vector<4x256xf32>
    %c4_48 = arith.constant 4 : index
    %c0_49 = arith.constant 0 : index
    %68 = vector.load %arg8[%c4_48, %c0_49] : memref<36x256xf32, #tpu.memory_space<vmem>>, vector<4x256xf32>
    tpu.vector_store %arg8[%c4_48, %c0_49], %67 {strides = array<i32>} : memref<36x256xf32, #tpu.memory_space<vmem>>, vector<4x256xf32>,
    %c0_50 = arith.constant 0 : index
    %c113_51 = arith.constant 113 : index
    %69 = vector.load %arg7[%c0_50, %c113_51] : memref<4x512xf32, #tpu.memory_space<vmem>>, vector<4x256xf32>
    %cst_52 = arith.constant 0.000000e+00 : f32
    %70 = vector.shape_cast %6 : vector<1x256xi1> to vector<1x256xi1>
    %71 = vector.broadcast %70 : vector<1x256xi1> to vector<4x256xi1>
    %72 = vector.broadcast %cst_52 : f32 to vector<4x256xf32>
    %73 = arith.select %71, %69, %72 : vector<4x256xi1>, vector<4x256xf32>
    %c8_53 = arith.constant 8 : index
    %c0_54 = arith.constant 0 : index
    %74 = vector.load %arg8[%c8_53, %c0_54] : memref<36x256xf32, #tpu.memory_space<vmem>>, vector<4x256xf32>
    tpu.vector_store %arg8[%c8_53, %c0_54], %73 {strides = array<i32>} : memref<36x256xf32, #tpu.memory_space<vmem>>, vector<4x256xf32>,
    %c0_55 = arith.constant 0 : index
    %c127_56 = arith.constant 127 : index
    %75 = vector.load %arg7[%c0_55, %c127_56] : memref<4x512xf32, #tpu.memory_space<vmem>>, vector<4x256xf32>
    %cst_57 = arith.constant 0.000000e+00 : f32
    %76 = vector.shape_cast %4 : vector<1x256xi1> to vector<1x256xi1>
    %77 = vector.broadcast %76 : vector<1x256xi1> to vector<4x256xi1>
    %78 = vector.broadcast %cst_57 : f32 to vector<4x256xf32>
    %79 = arith.select %77, %75, %78 : vector<4x256xi1>, vector<4x256xf32>
    %c12_58 = arith.constant 12 : index
    %c0_59 = arith.constant 0 : index
    %80 = vector.load %arg8[%c12_58, %c0_59] : memref<36x256xf32, #tpu.memory_space<vmem>>, vector<4x256xf32>
    tpu.vector_store %arg8[%c12_58, %c0_59], %79 {strides = array<i32>} : memref<36x256xf32, #tpu.memory_space<vmem>>, vector<4x256xf32>,
    %c0_60 = arith.constant 0 : index
    %c128_61 = arith.constant 128 : index
    %81 = vector.load %arg7[%c0_60, %c128_61] : memref<4x512xf32, #tpu.memory_space<vmem>>, vector<4x256xf32>
    %c16_62 = arith.constant 16 : index
    %c0_63 = arith.constant 0 : index
    %82 = vector.load %arg8[%c16_62, %c0_63] : memref<36x256xf32, #tpu.memory_space<vmem>>, vector<4x256xf32>
    tpu.vector_store %arg8[%c16_62, %c0_63], %81 {strides = array<i32>} : memref<36x256xf32, #tpu.memory_space<vmem>>, vector<4x256xf32>,
    %c0_64 = arith.constant 0 : index
    %c129_65 = arith.constant 129 : index
    %83 = vector.load %arg7[%c0_64, %c129_65] : memref<4x512xf32, #tpu.memory_space<vmem>>, vector<4x256xf32>
    %cst_66 = arith.constant 0.000000e+00 : f32
    %84 = vector.shape_cast %6 : vector<1x256xi1> to vector<1x256xi1>
    %85 = vector.broadcast %84 : vector<1x256xi1> to vector<4x256xi1>
    %86 = vector.broadcast %cst_66 : f32 to vector<4x256xf32>
    %87 = arith.select %85, %83, %86 : vector<4x256xi1>, vector<4x256xf32>
    %c20_67 = arith.constant 20 : index
    %c0_68 = arith.constant 0 : index
    %88 = vector.load %arg8[%c20_67, %c0_68] : memref<36x256xf32, #tpu.memory_space<vmem>>, vector<4x256xf32>
    tpu.vector_store %arg8[%c20_67, %c0_68], %87 {strides = array<i32>} : memref<36x256xf32, #tpu.memory_space<vmem>>, vector<4x256xf32>,
    %c0_69 = arith.constant 0 : index
    %c143_70 = arith.constant 143 : index
    %89 = vector.load %arg7[%c0_69, %c143_70] : memref<4x512xf32, #tpu.memory_space<vmem>>, vector<4x256xf32>
    %cst_71 = arith.constant 0.000000e+00 : f32
    %90 = vector.shape_cast %4 : vector<1x256xi1> to vector<1x256xi1>
    %91 = vector.broadcast %90 : vector<1x256xi1> to vector<4x256xi1>
    %92 = vector.broadcast %cst_71 : f32 to vector<4x256xf32>
    %93 = arith.select %91, %89, %92 : vector<4x256xi1>, vector<4x256xf32>
    %c24_72 = arith.constant 24 : index
    %c0_73 = arith.constant 0 : index
    %94 = vector.load %arg8[%c24_72, %c0_73] : memref<36x256xf32, #tpu.memory_space<vmem>>, vector<4x256xf32>
    tpu.vector_store %arg8[%c24_72, %c0_73], %93 {strides = array<i32>} : memref<36x256xf32, #tpu.memory_space<vmem>>, vector<4x256xf32>,
    %c0_74 = arith.constant 0 : index
    %c144_75 = arith.constant 144 : index
    %95 = vector.load %arg7[%c0_74, %c144_75] : memref<4x512xf32, #tpu.memory_space<vmem>>, vector<4x256xf32>
    %c28_76 = arith.constant 28 : index
    %c0_77 = arith.constant 0 : index
    %96 = vector.load %arg8[%c28_76, %c0_77] : memref<36x256xf32, #tpu.memory_space<vmem>>, vector<4x256xf32>
    tpu.vector_store %arg8[%c28_76, %c0_77], %95 {strides = array<i32>} : memref<36x256xf32, #tpu.memory_space<vmem>>, vector<4x256xf32>,
    %c0_78 = arith.constant 0 : index
    %c145_79 = arith.constant 145 : index
    %97 = vector.load %arg7[%c0_78, %c145_79] : memref<4x512xf32, #tpu.memory_space<vmem>>, vector<4x256xf32>
    %cst_80 = arith.constant 0.000000e+00 : f32
    %98 = vector.shape_cast %6 : vector<1x256xi1> to vector<1x256xi1>
    %99 = vector.broadcast %98 : vector<1x256xi1> to vector<4x256xi1>
    %100 = vector.broadcast %cst_80 : f32 to vector<4x256xf32>
    %101 = arith.select %99, %97, %100 : vector<4x256xi1>, vector<4x256xf32>
    %c32_81 = arith.constant 32 : index
    %c0_82 = arith.constant 0 : index
    %102 = vector.load %arg8[%c32_81, %c0_82] : memref<36x256xf32, #tpu.memory_space<vmem>>, vector<4x256xf32>
    tpu.vector_store %arg8[%c32_81, %c0_82], %101 {strides = array<i32>} : memref<36x256xf32, #tpu.memory_space<vmem>>, vector<4x256xf32>,
    %c0_83 = arith.constant 0 : index
    %c0_84 = arith.constant 0 : index
    %103 = vector.load %arg4[%c0_83, %c0_84] : memref<4x36xf32, #tpu.memory_space<vmem>>, vector<4x36xf32>
    %c0_85 = arith.constant 0 : index
    %c0_86 = arith.constant 0 : index
    %104 = vector.load %arg8[%c0_85, %c0_86] : memref<36x256xf32, #tpu.memory_space<vmem>>, vector<36x256xf32>
    %cst_87 = arith.constant dense<0.000000e+00> : vector<4x256xf32>
    %105 = tpu.matmul %103, %104, %cst_87 {dimension_numbers = #tpu.dot_dimension_numbers<[1], [0], [0], [1], [0, 0, 1, 1], [], []>} : vector<4x36xf32>, vector<36x256xf32>, vector<4x256xf32> -> vector<4x256xf32>
    %c0_88 = arith.constant 0 : index
    %c0_89 = arith.constant 0 : index
    %106 = vector.load %arg5[%c0_88, %c0_89] : memref<4x1xf32, #tpu.memory_space<vmem>>, vector<4x1xf32>
    %107 = vector.broadcast %106 : vector<4x1xf32> to vector<4x256xf32>
    %108 = arith.addf %105, %107 : vector<4x256xf32>
    %c0_90 = arith.constant 0 : index
    %c0_91 = arith.constant 0 : index
    %c0_92 = arith.constant 0 : index
    %109 = vector.load %arg6[%c0_90, %c0_91, %c0_92] : memref<1x4x256xf32, #tpu.memory_space<vmem>>, vector<1x4x256xf32>
    %110 = vector.shape_cast %109 : vector<1x4x256xf32> to vector<4x256xf32>
    %111 = vector.shape_cast %108 : vector<4x256xf32> to vector<1x4x256xf32>
    tpu.vector_store %arg6[%c0_90, %c0_91, %c0_92], %111 {strides = array<i32>} : memref<1x4x256xf32, #tpu.memory_space<vmem>>, vector<1x4x256xf32>,
    return
  }
  func.func @transform_0(%arg0: i32) -> (i32, i32, i32) {
    %c0_i32 = arith.constant 0 : i32
    %c0_i32_0 = arith.constant 0 : i32
    %c0_i32_1 = arith.constant 0 : i32
    return %arg0, %c0_i32, %c0_i32_0 : i32, i32, i32
  }
  func.func @transform_1(%arg0: i32) -> (i32, i32) {
    %c0_i32 = arith.constant 0 : i32
    %c0_i32_0 = arith.constant 0 : i32
    %c0_i32_1 = arith.constant 0 : i32
    return %c0_i32, %c0_i32_0 : i32, i32
  }
  func.func @transform_2(%arg0: i32) -> (i32, i32) {
    %c0_i32 = arith.constant 0 : i32
    %c0_i32_0 = arith.constant 0 : i32
    %c0_i32_1 = arith.constant 0 : i32
    return %c0_i32, %c0_i32_0 : i32, i32
  }
  func.func @transform_3(%arg0: i32) -> (i32, i32) {
    %c0_i32 = arith.constant 0 : i32
    %c0_i32_0 = arith.constant 0 : i32
    %c0_i32_1 = arith.constant 0 : i32
    return %c0_i32, %c0_i32_0 : i32, i32
  }
  func.func @transform_4(%arg0: i32) -> (i32, i32) {
    %c0_i32 = arith.constant 0 : i32
    %c0_i32_0 = arith.constant 0 : i32
    %c0_i32_1 = arith.constant 0 : i32
    return %c0_i32, %c0_i32_0 : i32, i32
  }
  func.func @transform_5(%arg0: i32) -> (i32, i32, i32) {
    %c0_i32 = arith.constant 0 : i32
    %c0_i32_0 = arith.constant 0 : i32
    %c0_i32_1 = arith.constant 0 : i32
    return %arg0, %c0_i32, %c0_i32_0 : i32, i32, i32
  }
}

</mosaic_0001>

<llo_original>
// kernel: tpu_custom_call.1
$region0: #{tpu_custom_call.1}
  #allocation0 [shape = 'u32[]', space=smem, size = 0x4, offset = 0x4, fixed_abs, tag = 'smem constant byte address 0x4 - core index']
  #allocation1 [shape = 'u32[144,128]{1,0:T(1,128)}', space=vmem, size = 0x12000, scoped, tag = 'internal scratch']
  #allocation2 [shape = 'f32[4,512]{1,0:T(4,128)}', space=vmem, size = 0x2000, scoped, tag = 'scratch operand']
  #allocation3 [shape = 'f32[36,256]{1,0:T(8,128)}', space=vmem, size = 0xa000, scoped, tag = 'scratch operand']
  %s0 = inlined_call_operand.hbm [shape: f32[2,4,256], index: 0, kind: input, shape index: {}]
  %s1 = inlined_call_operand.vmem [shape: f32[4,36], index: 1, kind: input, shape index: {}]
  %s2 = inlined_call_operand.vmem [shape: f32[4,1], index: 2, kind: input, shape index: {}]
  %s3 = inlined_call_operand.vmem [shape: f32[4,36], index: 3, kind: input, shape index: {}]
  %s4 = inlined_call_operand.vmem [shape: f32[4,1], index: 4, kind: input, shape index: {}]
  %s5 = inlined_call_operand.hbm [shape: f32[2,4,256], index: 5, kind: output, shape index: {}]
  %s6 = sld [smem:[#allocation0]]
  $region57: #{tpu_custom_call.1} parent=0
    _
  %s8 = ssub.s32 1, %s6
  %s9 = scalar_select 0, %s8, %s6
  $region1: #{tpu_custom_call.1} parent=0
    #allocation4 [shape = 'u8[8192]{0}', space=vmem, size = 0x2000, scoped, tag = 'input window, operand 0']
    #allocation5 [shape = 's32[2]{0}', space=sflag, size = 0x8, scoped, tag = 'scoped memory for tpu_custom_call.1']
    #allocation6 [shape = 's32[2]{0}', space=sflag, size = 0x8, scoped, tag = 'scoped memory for tpu_custom_call.1']
    #allocation7 [shape = 'u8[8192]{0}', space=vmem, size = 0x2000, scoped, tag = 'output window, operand 0']
    %10 = vsyncpa [#allocation5], 0
    %s11 = scalar_lea.sflag [#allocation5], 1
    %12 = vsyncpa %s11, 0
    %13 = vsyncpa [#allocation6], 0
    %s14 = scalar_lea.sflag [#allocation6], 1
    %15 = vsyncpa %s14, 0
    loop: start=0, step=1, limit=4
    $region2: #{tpu_custom_call.1} parent=1 // loop_pre_header
      _
    $region3: #{tpu_custom_call.1} parent=1 // loop_header
      %s17 = sphi 0, %s21
      %p18 = scmp.ge.s32.totalorder %s17, 4
      %s27 = sphi 0, %s29
      %s30 = sphi 0, %s27
      %s31 = sphi 0, %s30
      %s47 = sphi 0, %s31
      %s51 = sphi 0, %s51
      %s53 = sphi 0, %s51
      %s54 = sphi 0, %s53
      %s68 = sphi 0, %s54
      %s72 = sphi 0, %s72
      %s74 = sphi 0, %s72
      %s75 = sphi 0, %s74
      %s89 = sphi 0, %s75
      %s93 = sphi 0, %s93
      %s95 = sphi 0, %s93
      %s96 = sphi 0, %s95
      %s110 = sphi 0, %s96
      %s114 = sphi 0, %s114
      %s116 = sphi 0, %s114
      %s117 = sphi 0, %s116
      %s131 = sphi 0, %s117
      %s137 = sphi 0, %s139
      %s140 = sphi 0, %s137
      %s141 = sphi 0, %s140
      %s157 = sphi 0, %s141
    $region4: #{tpu_custom_call.1} parent=1 // loop_header_branch
      %20 = sbr.rel (%p18) target = $region8
    $region5: #{tpu_custom_call.1} parent=1 // loop_body
      %s22 = ssub.s32 %s17, 1
      %s23 = ssub.s32 %s17, 2
      %s24 = sadd.s32 %s17, 1
      %s25 = ssub.s32 %s17, %s24
      %p26 = scmp.eq.s32.totalorder %s25, 0
      %s28 = sadd.s32 %s27, 1
      %s29 = scalar_select %p26, %s27, %s28
      %p32 = pneg %p26
      %p33 = scmp.eq.s32.totalorder %s17, 1
      %p34 = por %p32, %p33
      %p35 = scmp.ne.s32.totalorder %s27, %s30
      %p36 = scmp.eq.s32.totalorder %s17, 0
      %p37 = por %p35, %p36
      %p38 = scmp.ne.s32.totalorder %s27, %s30
      %p39 = scmp.eq.s32.totalorder %s22, 1
      %p40 = por %p38, %p39
      %p41 = scmp.ne.s32.totalorder %s30, %s31
      %p42 = scmp.eq.s32.totalorder %s22, 0
      %p43 = por %p41, %p42
      %p44 = scmp.ne.s32.totalorder %s30, %s31
      %p45 = scmp.eq.s32.totalorder %s23, 1
      %p46 = por %p44, %p45
      %p48 = scmp.ne.s32.totalorder %s31, %s47
      %p49 = scmp.eq.s32.totalorder %s23, 0
      %p50 = por %p48, %p49
      %s52 = sadd.s32 %s51, 1
      %p55 = scmp.eq.s32.totalorder %s17, 1
      %p56 = scmp.ne.s32.totalorder %s51, %s53
      %p57 = scmp.eq.s32.totalorder %s17, 0
      %p58 = por %p56, %p57
      %p59 = scmp.ne.s32.totalorder %s51, %s53
      %p60 = scmp.eq.s32.totalorder %s22, 1
      %p61 = por %p59, %p60
      %p62 = scmp.ne.s32.totalorder %s53, %s54
      %p63 = scmp.eq.s32.totalorder %s22, 0
      %p64 = por %p62, %p63
      %p65 = scmp.ne.s32.totalorder %s53, %s54
      %p66 = scmp.eq.s32.totalorder %s23, 1
      %p67 = por %p65, %p66
      %p69 = scmp.ne.s32.totalorder %s54, %s68
      %p70 = scmp.eq.s32.totalorder %s23, 0
      %p71 = por %p69, %p70
      %s73 = sadd.s32 %s72, 1
      %p76 = scmp.eq.s32.totalorder %s17, 1
      %p77 = scmp.ne.s32.totalorder %s72, %s74
      %p78 = scmp.eq.s32.totalorder %s17, 0
      %p79 = por %p77, %p78
      %p80 = scmp.ne.s32.totalorder %s72, %s74
      %p81 = scmp.eq.s32.totalorder %s22, 1
      %p82 = por %p80, %p81
      %p83 = scmp.ne.s32.totalorder %s74, %s75
      %p84 = scmp.eq.s32.totalorder %s22, 0
      %p85 = por %p83, %p84
      %p86 = scmp.ne.s32.totalorder %s74, %s75
      %p87 = scmp.eq.s32.totalorder %s23, 1
      %p88 = por %p86, %p87
      %p90 = scmp.ne.s32.totalorder %s75, %s89
      %p91 = scmp.eq.s32.totalorder %s23, 0
      %p92 = por %p90, %p91
      %s94 = sadd.s32 %s93, 1
      %p97 = scmp.eq.s32.totalorder %s17, 1
      %p98 = scmp.ne.s32.totalorder %s93, %s95
      %p99 = scmp.eq.s32.totalorder %s17, 0
      %p100 = por %p98, %p99
      %p101 = scmp.ne.s32.totalorder %s93, %s95
      %p102 = scmp.eq.s32.totalorder %s22, 1
      %p103 = por %p101, %p102
      %p104 = scmp.ne.s32.totalorder %s95, %s96
      %p105 = scmp.eq.s32.totalorder %s22, 0
      %p106 = por %p104, %p105
      %p107 = scmp.ne.s32.totalorder %s95, %s96
      %p108 = scmp.eq.s32.totalorder %s23, 1
      %p109 = por %p107, %p108
      %p111 = scmp.ne.s32.totalorder %s96, %s110
      %p112 = scmp.eq.s32.totalorder %s23, 0
      %p113 = por %p111, %p112
      %s115 = sadd.s32 %s114, 1
      %p118 = scmp.eq.s32.totalorder %s17, 1
      %p119 = scmp.ne.s32.totalorder %s114, %s116
      %p120 = scmp.eq.s32.totalorder %s17, 0
      %p121 = por %p119, %p120
      %p122 = scmp.ne.s32.totalorder %s114, %s116
      %p123 = scmp.eq.s32.totalorder %s22, 1
      %p124 = por %p122, %p123
      %p125 = scmp.ne.s32.totalorder %s116, %s117
      %p126 = scmp.eq.s32.totalorder %s22, 0
      %p127 = por %p125, %p126
      %p128 = scmp.ne.s32.totalorder %s116, %s117
      %p129 = scmp.eq.s32.totalorder %s23, 1
      %p130 = por %p128, %p129
      %p132 = scmp.ne.s32.totalorder %s117, %s131
      %p133 = scmp.eq.s32.totalorder %s23, 0
      %p134 = por %p132, %p133
      %s135 = ssub.s32 %s17, %s24
      %p136 = scmp.eq.s32.totalorder %s135, 0
      %s138 = sadd.s32 %s137, 1
      %s139 = scalar_select %p136, %s137, %s138
      %p142 = pneg %p136
      %p143 = scmp.eq.s32.totalorder %s17, 1
      %p144 = por %p142, %p143
      %p145 = scmp.ne.s32.totalorder %s137, %s140
      %p146 = scmp.eq.s32.totalorder %s17, 0
      %p147 = por %p145, %p146
      %p148 = scmp.ne.s32.totalorder %s137, %s140
      %p149 = scmp.eq.s32.totalorder %s22, 1
      %p150 = por %p148, %p149
      %p151 = scmp.ne.s32.totalorder %s140, %s141
      %p152 = scmp.eq.s32.totalorder %s22, 0
      %p153 = por %p151, %p152
      %p154 = scmp.ne.s32.totalorder %s140, %s141
      %p155 = scmp.eq.s32.totalorder %s23, 1
      %p156 = por %p154, %p155
      %p158 = scmp.ne.s32.totalorder %s141, %s157
      %p159 = scmp.eq.s32.totalorder %s23, 0
      %p160 = por %p158, %p159
      %p161 = scmp.le.s32.totalorder 1, %s17
      %p162 = scmp.lt.s32.totalorder %s17, 3
      %p163 = pnand %p161, %p162
      %p164 = pneg %p163
      // Predicated region
      $region9: #{tpu_custom_call.1} parent=5 // pred_check
        _
      $region10: #{tpu_custom_call.1} parent=5 // pred_check_branch
        %166 = sbr.rel (%p163) target = $region12
      $region11: #{tpu_custom_call.1} parent=5 // pred_region
        %s167 = ssub.s32 %s17, 1
        // Predicated region
        $region13: #{tpu_custom_call.1} parent=11 // pred_check
          %p168 = pneg %p64
        $region14: #{tpu_custom_call.1} parent=11 // pred_check_branch
          %170 = sbr.rel (%p168) target = $region16
        $region15: #{tpu_custom_call.1} parent=11 // pred_region
          _
        $region16: #{tpu_custom_call.1} parent=11 // pred_fallthru
          _
        // Predicated region
        $region17: #{tpu_custom_call.1} parent=11 // pred_check
          %p171 = pneg %p85
        $region18: #{tpu_custom_call.1} parent=11 // pred_check_branch
          %173 = sbr.rel (%p171) target = $region20
        $region19: #{tpu_custom_call.1} parent=11 // pred_region
          _
        $region20: #{tpu_custom_call.1} parent=11 // pred_fallthru
          _
        // Predicated region
        $region21: #{tpu_custom_call.1} parent=11 // pred_check
          %p174 = pneg %p106
        $region22: #{tpu_custom_call.1} parent=11 // pred_check_branch
          %176 = sbr.rel (%p174) target = $region24
        $region23: #{tpu_custom_call.1} parent=11 // pred_region
          _
        $region24: #{tpu_custom_call.1} parent=11 // pred_fallthru
          _
        // Predicated region
        $region25: #{tpu_custom_call.1} parent=11 // pred_check
          %p177 = pneg %p127
        $region26: #{tpu_custom_call.1} parent=11 // pred_check_branch
          %179 = sbr.rel (%p177) target = $region28
        $region27: #{tpu_custom_call.1} parent=11 // pred_region
          _
        $region28: #{tpu_custom_call.1} parent=11 // pred_fallthru
          _
      $region12: #{tpu_custom_call.1} parent=5 // pred_fallthru
        _
      %p180 = scmp.lt.s32.totalorder %s17, 2
      // Predicated region
      $region29: #{tpu_custom_call.1} parent=5 // pred_check
        %p181 = pneg %p180
      $region30: #{tpu_custom_call.1} parent=5 // pred_check_branch
        %183 = sbr.rel (%p181) target = $region32
      $region31: #{tpu_custom_call.1} parent=5 // pred_region
        // Predicated region
        $region33: #{tpu_custom_call.1} parent=31 // pred_check
          %p184 = pneg %p37
        $region34: #{tpu_custom_call.1} parent=31 // pred_check_branch
          %186 = sbr.rel (%p184) target = $region36
        $region35: #{tpu_custom_call.1} parent=31 // pred_region
          %s187 = sand.u32 %s27, 1
          %s188 = scalar_lea.sflag [#allocation5], %s187
          %s189 = sand.u32 %s27, 1
          %s190 = smul.addr %s189, 8
          %s191 = scalar_lea.vmem [#allocation4], %s190
          %s193 = ssub.s32 128, 128
          %194 = vsyncadd %s188, %s193
          %s195 = smul.addr %s17, 2
          %s196 = smul.addr %s195, 64
          %s197 = scalar_lea.hbm %s0, %s196
          %s199 = sshll.u32 %s191, 4
          %s200 = int_to_ptr.vmem [resolvable:$true] %s199
          %202 = dma.hbm_to_vmem [thread:$0]  %s197, 128, %s200, %s188
        $region36: #{tpu_custom_call.1} parent=31 // pred_fallthru
          _
      $region32: #{tpu_custom_call.1} parent=5 // pred_fallthru
        _
      %p203 = scmp.le.s32.totalorder 1, %s17
      %p204 = scmp.lt.s32.totalorder %s17, 3
      %p205 = pnand %p203, %p204
      %p206 = pneg %p205
      // Predicated region
      $region37: #{tpu_custom_call.1} parent=5 // pred_check
        _
      $region38: #{tpu_custom_call.1} parent=5 // pred_check_branch
        %208 = sbr.rel (%p205) target = $region40
      $region39: #{tpu_custom_call.1} parent=5 // pred_region
        %s209 = ssub.s32 %s17, 1
        %s210 = sand.u32 %s30, 1
        %s211 = scalar_lea.sflag [#allocation5], %s210
        %s212 = sand.u32 %s30, 1
        %s213 = smul.addr %s212, 8
        %s214 = scalar_lea.vmem [#allocation4], %s213
        // Predicated region
        $region41: #{tpu_custom_call.1} parent=39 // pred_check
          %p215 = pneg %p43
        $region42: #{tpu_custom_call.1} parent=39 // pred_check_branch
          %217 = sbr.rel (%p215) target = $region44
        $region43: #{tpu_custom_call.1} parent=39 // pred_region
          %218 = dma.done %s211, 128
        $region44: #{tpu_custom_call.1} parent=39 // pred_fallthru
          _
        %s219 = sand.u32 %s30, 1
        %s220 = scalar_lea.sflag [#allocation5], %s219
        %s221 = sand.u32 %s30, 1
        %s222 = smul.addr %s221, 8
        %s223 = scalar_lea.vmem [#allocation4], %s222
        %p224 = pneg %p43
        %p225 = pneg %p40
        %p226 = pneg %p64
        %p227 = pneg %p61
        %p228 = pneg %p85
        %p229 = pneg %p82
        %p230 = pneg %p106
        %p231 = pneg %p103
        %p232 = pneg %p127
        %p233 = pneg %p124
        %p234 = pneg %p153
        %p235 = pneg %p150
        %s236 = sand.u32 %s140, 1
        %s237 = scalar_lea.sflag [#allocation6], %s236
        %s238 = sand.u32 %s140, 1
        %s239 = smul.addr %s238, 8
        %s240 = scalar_lea.vmem [#allocation7], %s239
        %v241 = vlaneseq
        %v242 = vand.u32 %v241, 127
        %v243 = vadd.s32 %v242, 128
        %v244 = vand.u32 %v242, 15
        %v245 = vand.u32 %v243, 15
        %vm246 = vcmp.gt.s32.totalorder %v244, 0
        %vm247 = vcmp.gt.s32.totalorder %v245, 0
        %vm248 = vcmp.lt.s32.totalorder %v244, 15
        %vm249 = vcmp.lt.s32.totalorder %v245, 15
        %250 = vst [vmem:[#allocation2] sm:$0xff] 0.0
        %251 = vst [vmem:[#allocation2 + $0x8] sm:$0xff] 0.0
        %v252 = vld [vmem:[%s214] sm:$0xff]
        %253 = vst [vmem:[#allocation2 + $0x4] sm:$0xff] %v252
        %v254 = vld [vmem:[#allocation2] sm:$0xff]
        %v255 = vld [vmem:[#allocation2 + $0x8] sm:$0xf]
        %v256 = vsel %vm246, 1, 0
        %v257 = vsel %vm247, 1, 0
        %vm258 = vcmp.eq.s32.totalorder %v256, 1
        %vm259 = vcmp.eq.s32.totalorder %v257, 1
        %v262 = vcombine.high %v254, %v254
        %263 = vrot.lane.b32.xlu0 %v254, 17
        %v264 = vpop.permute.xlu0 %263
        %265 = vrot.lane.b32.xlu0 %v262, 17
        %v266 = vpop.permute.xlu0 %265
        %267 = vrot.lane.b32.xlu0 %v255, 17
        %v268 = vpop.permute.xlu0 %267
        %vm269 = vcmask 138240
        %v270 = vsel %vm269, %v264, %v266
        %v271 = vsel %vm269, %v266, %v268
        %v274 = vsel %vm258, %v270, 0.0
        %v275 = vsel %vm259, %v271, 0.0
        %276 = vst [vmem:[#allocation3] sm:$0xf] %v274
        %277 = vst [vmem:[#allocation3 + $0x8] sm:$0xf] %v275
        %v278 = vld [vmem:[#allocation2] sm:$0xff]
        %v279 = vld [vmem:[#allocation2 + $0x8] sm:$0xf]
        %v282 = vcombine.low %v278, %v278
        %v283 = vcombine.low %v279, %v279
        %284 = vrot.lane.b32.xlu0 %v282, 16
        %v285 = vpop.permute.xlu0 %284
        %286 = vrot.lane.b32.xlu0 %v278, 16
        %v287 = vpop.permute.xlu0 %286
        %288 = vrot.lane.b32.xlu0 %v283, 16
        %v289 = vpop.permute.xlu0 %288
        %vm290 = vcmask 130048
        %v291 = vsel %vm290, %v285, %v287
        %v292 = vsel %vm290, %v287, %v289
        %295 = vst [vmem:[#allocation3] sm:$0xf0] %v291
        %296 = vst [vmem:[#allocation3 + $0x8] sm:$0xf0] %v292
        %v297 = vld [vmem:[#allocation2] sm:$0xff]
        %v298 = vld [vmem:[#allocation2 + $0x8] sm:$0xf]
        %v299 = vsel %vm248, 1, 0
        %v300 = vsel %vm249, 1, 0
        %vm301 = vcmp.eq.s32.totalorder %v299, 1
        %vm302 = vcmp.eq.s32.totalorder %v300, 1
        %v305 = vcombine.high %v297, %v297
        %306 = vrot.lane.b32.xlu0 %v297, 15
        %v307 = vpop.permute.xlu0 %306
        %308 = vrot.lane.b32.xlu0 %v305, 15
        %v309 = vpop.permute.xlu0 %308
        %310 = vrot.lane.b32.xlu0 %v298, 15
        %v311 = vpop.permute.xlu0 %310
        %vm312 = vcmask 121856
        %v313 = vsel %vm312, %v307, %v309
        %v314 = vsel %vm312, %v309, %v311
        %v317 = vsel %vm301, %v313, 0.0
        %v318 = vsel %vm302, %v314, 0.0
        %319 = vst [vmem:[#allocation3 + $0x10] sm:$0xf] %v317
        %320 = vst [vmem:[#allocation3 + $0x18] sm:$0xf] %v318
        %v321 = vld [vmem:[#allocation2] sm:$0xff]
        %v322 = vld [vmem:[#allocation2 + $0x8] sm:$0xf]
        %v325 = vcombine.high %v321, %v321
        %326 = vrot.lane.b32.xlu0 %v321, 1
        %v327 = vpop.permute.xlu0 %326
        %328 = vrot.lane.b32.xlu0 %v325, 1
        %v329 = vpop.permute.xlu0 %328
        %330 = vrot.lane.b32.xlu0 %v322, 1
        %v331 = vpop.permute.xlu0 %330
        %vm332 = vcmask 7168
        %v333 = vsel %vm332, %v327, %v329
        %v334 = vsel %vm332, %v329, %v331
        %v337 = vsel %vm258, %v333, 0.0
        %v338 = vsel %vm259, %v334, 0.0
        %v341 = vrot.slane %v337, 4
        %v342 = vrot.slane %v338, 4
        %345 = vst [vmem:[#allocation3 + $0x10] sm:$0xf0] %v341
        %346 = vst [vmem:[#allocation3 + $0x18] sm:$0xf0] %v342
        %v347 = vld [vmem:[#allocation2 + $0x4] sm:$0xff]
        %v349 = vcombine.high %v347, %v347
        %351 = vst [vmem:[#allocation3 + $0x20] sm:$0xf] %v347
        %352 = vst [vmem:[#allocation3 + $0x28] sm:$0xf] %v349
        %v353 = vld [vmem:[#allocation2 + $0x4] sm:$0xff]
        %v354 = vld [vmem:[#allocation2 + $0xc] sm:$0xf]
        %v357 = vcombine.high %v353, %v353
        %358 = vrot.lane.b32.xlu0 %v353, 127
        %v359 = vpop.permute.xlu0 %358
        %360 = vrot.lane.b32.xlu0 %v357, 127
        %v361 = vpop.permute.xlu0 %360
        %362 = vrot.lane.b32.xlu0 %v354, 127
        %v363 = vpop.permute.xlu0 %362
        %vm364 = vcmask 1039360
        %v365 = vsel %vm364, %v359, %v361
        %v366 = vsel %vm364, %v361, %v363
        %v369 = vsel %vm301, %v365, 0.0
        %v370 = vsel %vm302, %v366, 0.0
        %v373 = vrot.slane %v369, 4
        %v374 = vrot.slane %v370, 4
        %377 = vst [vmem:[#allocation3 + $0x20] sm:$0xf0] %v373
        %378 = vst [vmem:[#allocation3 + $0x28] sm:$0xf0] %v374
        %v379 = vld [vmem:[#allocation2 + $0x4] sm:$0xff]
        %v380 = vld [vmem:[#allocation2 + $0xc] sm:$0xf]
        %v383 = vcombine.high %v379, %v379
        %384 = vrot.lane.b32.xlu0 %v379, 113
        %v385 = vpop.permute.xlu0 %384
        %386 = vrot.lane.b32.xlu0 %v383, 113
        %v387 = vpop.permute.xlu0 %386
        %388 = vrot.lane.b32.xlu0 %v380, 113
        %v389 = vpop.permute.xlu0 %388
        %vm390 = vcmask 924672
        %v391 = vsel %vm390, %v385, %v387
        %v392 = vsel %vm390, %v387, %v389
        %v395 = vsel %vm258, %v391, 0.0
        %v396 = vsel %vm259, %v392, 0.0
        %397 = vst [vmem:[#allocation3 + $0x30] sm:$0xf] %v395
        %398 = vst [vmem:[#allocation3 + $0x38] sm:$0xf] %v396
        %v399 = vld [vmem:[#allocation2 + $0x4] sm:$0xff]
        %v400 = vld [vmem:[#allocation2 + $0xc] sm:$0xf]
        %v403 = vcombine.low %v399, %v399
        %v404 = vcombine.low %v400, %v400
        %405 = vrot.lane.b32.xlu0 %v403, 112
        %v406 = vpop.permute.xlu0 %405
        %407 = vrot.lane.b32.xlu0 %v399, 112
        %v408 = vpop.permute.xlu0 %407
        %409 = vrot.lane.b32.xlu0 %v404, 112
        %v410 = vpop.permute.xlu0 %409
        %vm411 = vcmask 916480
        %v412 = vsel %vm411, %v406, %v408
        %v413 = vsel %vm411, %v408, %v410
        %416 = vst [vmem:[#allocation3 + $0x30] sm:$0xf0] %v412
        %417 = vst [vmem:[#allocation3 + $0x38] sm:$0xf0] %v413
        %v418 = vld [vmem:[#allocation2 + $0x4] sm:$0xff]
        %v419 = vld [vmem:[#allocation2 + $0xc] sm:$0xf]
        %v422 = vcombine.high %v418, %v418
        %423 = vrot.lane.b32.xlu0 %v418, 111
        %v424 = vpop.permute.xlu0 %423
        %425 = vrot.lane.b32.xlu0 %v422, 111
        %v426 = vpop.permute.xlu0 %425
        %427 = vrot.lane.b32.xlu0 %v419, 111
        %v428 = vpop.permute.xlu0 %427
        %vm429 = vcmask 908288
        %v430 = vsel %vm429, %v424, %v426
        %v431 = vsel %vm429, %v426, %v428
        %v434 = vsel %vm301, %v430, 0.0
        %v435 = vsel %vm302, %v431, 0.0
        %436 = vst [vmem:[#allocation3 + $0x40] sm:$0xf] %v434
        %437 = vst [vmem:[#allocation3 + $0x48] sm:$0xf] %v435
        %v438 = vld [vmem:[%s1] sm:$0xf]
        %v439 = vld [vmem:[#allocation3] sm:$0xff]
        %v440 = vld [vmem:[#allocation3 + $0x8] sm:$0xff]
        %v441 = vld [vmem:[#allocation3 + $0x10] sm:$0xff]
        %v442 = vld [vmem:[#allocation3 + $0x18] sm:$0xff]
        %v443 = vld [vmem:[#allocation3 + $0x20] sm:$0xff]
        %v444 = vld [vmem:[#allocation3 + $0x28] sm:$0xff]
        %v445 = vld [vmem:[#allocation3 + $0x30] sm:$0xff]
        %v446 = vld [vmem:[#allocation3 + $0x38] sm:$0xff]
        %v447 = vld [vmem:[#allocation3 + $0x40] sm:$0xf]
        %v448 = vld [vmem:[#allocation3 + $0x48] sm:$0xf]
        %v449 = vld [vmem:[%s2] sm:$0xf]
        %451 = vset.pattern.permute.xlu0 0
        %452 = vperm.xlu0 %451, %v449
        %v453 = vpop.permute.xlu0 %452
        %vm455 = vcmask 293888
        %v457 = vsel %vm455, %v438, 0
        %vm459 = vcmask 1043456
        %v461 = vsel %vm459, %v447, 0
        %v464 = vsel %vm459, %v448, 0
        %466 = vmatprep.subr.mxu0 %v440
        %467 = vmatpush1.msra.mxu0 %v439
        %468 = vmatprep.subr.mxu0 %v442
        %469 = vmatpush1.msra.mxu0 %v441
        %470 = vmatprep.subr.mxu0 %v444
        %471 = vmatpush1.msra.mxu0 %v443
        %472 = vmatprep.subr.mxu0 %v446
        %473 = vmatpush1.msra.mxu0 %v445
        %474 = vmatprep.subr.mxu0 %v464
        %475 = vmatpush1.msra.mxu0 %v461
        %476 = vmatprep.subr.mxu0 0.0
        %477 = vmatpush1.msra.mxu0 0.0
        %478 = vmatprep.subr.mxu0 0.0
        %479 = vmatpush1.msra.mxu0 0.0
        %480 = vmatprep.subr.mxu0 0.0
        %481 = vmatpush1.msra.mxu0 0.0
        %482 = vmatprep.subr.mxu0 0.0
        %483 = vmatpush1.msra.mxu0 0.0
        %484 = vmatprep.subr.mxu0 0.0
        %485 = vmatpush1.msra.mxu0 0.0
        %486 = vmatprep.subr.mxu0 0.0
        %487 = vmatpush1.msra.mxu0 0.0
        %488 = vmatprep.subr.mxu0 0.0
        %489 = vmatpush1.msra.mxu0 0.0
        %490 = vmatprep.subr.mxu0 0.0
        %491 = vmatpush1.msra.mxu0 0.0
        %492 = vmatprep.subr.mxu0 0.0
        %493 = vmatpush1.msra.mxu0 0.0
        %494 = vmatprep.subr.mxu0 0.0
        %495 = vmatpush1.msra.mxu0 0.0
        %496 = vmatprep.subr.mxu0 0.0
        %497 = vmatpush1.msra.mxu0 0.0
        %498 = vmatprep.subr.mxu0 0.0
        %499 = vmatpush1.msra.mxu0 0.0
        %500 = vmatprep.subr.mxu0 0.0
        %501 = vmatpush1.msra.mxu0 0.0
        %502 = vmatprep.subr.mxu0 0.0
        %503 = vmatpush1.msra.mxu0 0.0
        %504 = vmatprep.subr.mxu0 0.0
        %505 = vmatpush1.msra.mxu0 0.0
        %506 = vmatprep.subr.mxu0 0.0
        %507 = vmatpush1.msra.mxu0 0.0
        %508 = vmatprep.subr.mxu0 0.0
        %509 = vmatpush1.msra.mxu0 0.0
        %510 = vmatprep.subr.mxu0 0.0
        %511 = vmatpush1.msra.mxu0 0.0
        %512 = vmatprep.subr.mxu0 0.0
        %513 = vmatpush1.msra.mxu0 0.0
        %514 = vmatprep.subr.mxu0 0.0
        %515 = vmatpush1.msra.mxu0 0.0
        %516 = vmatprep.subr.mxu0 0.0
        %517 = vmatpush1.msra.mxu0 0.0
        %518 = vmatprep.subr.mxu0 0.0
        %519 = vmatpush1.msra.mxu0 0.0
        %520 = vmatprep.subr.mxu0 0.0
        %521 = vmatpush1.msra.mxu0 0.0
        %522 = vmatprep.subr.mxu0 0.0
        %523 = vmatpush1.msra.mxu0 0.0
        %524 = vmatprep.subr.mxu0 0.0
        %525 = vmatpush1.msra.mxu0 0.0
        %526 = vmatprep.subr.mxu0 0.0
        %527 = vmatpush1.msra.mxu0 0.0
        %528 = vmatprep.subr.mxu0 0.0
        %529 = vmatpush1.msra.mxu0 0.0
        %530 = vmatprep.mubr.f32.mxu0 0.0
        %531 = vmatmul.mubr.f32.gmra.mrb[0].mxu0 %v457
        %v532 = vpop.f32.mrb[0].mxu0
        %v533 = vadd.f32 %v453, %v532
        %v534 = vpop.f32.mrb[0].mxu0
        %v535 = vadd.f32 %v453, %v534
        %536 = vdwg.mxu0
        %v539 = vcombine.low %v533, %v535
        %541 = vst [vmem:[#allocation2 + $0x4] sm:$0xff] %v539
        %v542 = vld [vmem:[#allocation2] sm:$0xff]
        %v543 = vld [vmem:[#allocation2 + $0x8] sm:$0xf]
        %v546 = vcombine.high %v542, %v542
        %547 = vrot.lane.b32.xlu0 %v542, 17
        %v548 = vpop.permute.xlu0 %547
        %549 = vrot.lane.b32.xlu0 %v546, 17
        %v550 = vpop.permute.xlu0 %549
        %551 = vrot.lane.b32.xlu0 %v543, 17
        %v552 = vpop.permute.xlu0 %551
        %v553 = vsel %vm269, %v548, %v550
        %v554 = vsel %vm269, %v550, %v552
        %v557 = vsel %vm258, %v553, 0.0
        %v558 = vsel %vm259, %v554, 0.0
        %559 = vst [vmem:[#allocation3] sm:$0xf] %v557
        %560 = vst [vmem:[#allocation3 + $0x8] sm:$0xf] %v558
        %v561 = vld [vmem:[#allocation2] sm:$0xff]
        %v562 = vld [vmem:[#allocation2 + $0x8] sm:$0xf]
        %v565 = vcombine.low %v561, %v561
        %v566 = vcombine.low %v562, %v562
        %567 = vrot.lane.b32.xlu0 %v565, 16
        %v568 = vpop.permute.xlu0 %567
        %569 = vrot.lane.b32.xlu0 %v561, 16
        %v570 = vpop.permute.xlu0 %569
        %571 = vrot.lane.b32.xlu0 %v566, 16
        %v572 = vpop.permute.xlu0 %571
        %v573 = vsel %vm290, %v568, %v570
        %v574 = vsel %vm290, %v570, %v572
        %577 = vst [vmem:[#allocation3] sm:$0xf0] %v573
        %578 = vst [vmem:[#allocation3 + $0x8] sm:$0xf0] %v574
        %v579 = vld [vmem:[#allocation2] sm:$0xff]
        %v580 = vld [vmem:[#allocation2 + $0x8] sm:$0xf]
        %v583 = vcombine.high %v579, %v579
        %584 = vrot.lane.b32.xlu0 %v579, 15
        %v585 = vpop.permute.xlu0 %584
        %586 = vrot.lane.b32.xlu0 %v583, 15
        %v587 = vpop.permute.xlu0 %586
        %588 = vrot.lane.b32.xlu0 %v580, 15
        %v589 = vpop.permute.xlu0 %588
        %v590 = vsel %vm312, %v585, %v587
        %v591 = vsel %vm312, %v587, %v589
        %v594 = vsel %vm301, %v590, 0.0
        %v595 = vsel %vm302, %v591, 0.0
        %596 = vst [vmem:[#allocation3 + $0x10] sm:$0xf] %v594
        %597 = vst [vmem:[#allocation3 + $0x18] sm:$0xf] %v595
        %v598 = vld [vmem:[#allocation2] sm:$0xff]
        %v599 = vld [vmem:[#allocation2 + $0x8] sm:$0xf]
        %v602 = vcombine.high %v598, %v598
        %603 = vrot.lane.b32.xlu0 %v598, 1
        %v604 = vpop.permute.xlu0 %603
        %605 = vrot.lane.b32.xlu0 %v602, 1
        %v606 = vpop.permute.xlu0 %605
        %607 = vrot.lane.b32.xlu0 %v599, 1
        %v608 = vpop.permute.xlu0 %607
        %v609 = vsel %vm332, %v604, %v606
        %v610 = vsel %vm332, %v606, %v608
        %v613 = vsel %vm258, %v609, 0.0
        %v614 = vsel %vm259, %v610, 0.0
        %v617 = vrot.slane %v613, 4
        %v618 = vrot.slane %v614, 4
        %621 = vst [vmem:[#allocation3 + $0x10] sm:$0xf0] %v617
        %622 = vst [vmem:[#allocation3 + $0x18] sm:$0xf0] %v618
        %v623 = vld [vmem:[#allocation2 + $0x4] sm:$0xff]
        %v625 = vcombine.high %v623, %v623
        %627 = vst [vmem:[#allocation3 + $0x20] sm:$0xf] %v623
        %628 = vst [vmem:[#allocation3 + $0x28] sm:$0xf] %v625
        %v629 = vld [vmem:[#allocation2 + $0x4] sm:$0xff]
        %v630 = vld [vmem:[#allocation2 + $0xc] sm:$0xf]
        %v633 = vcombine.high %v629, %v629
        %634 = vrot.lane.b32.xlu0 %v629, 127
        %v635 = vpop.permute.xlu0 %634
        %636 = vrot.lane.b32.xlu0 %v633, 127
        %v637 = vpop.permute.xlu0 %636
        %638 = vrot.lane.b32.xlu0 %v630, 127
        %v639 = vpop.permute.xlu0 %638
        %v640 = vsel %vm364, %v635, %v637
        %v641 = vsel %vm364, %v637, %v639
        %v644 = vsel %vm301, %v640, 0.0
        %v645 = vsel %vm302, %v641, 0.0
        %v648 = vrot.slane %v644, 4
        %v649 = vrot.slane %v645, 4
        %652 = vst [vmem:[#allocation3 + $0x20] sm:$0xf0] %v648
        %653 = vst [vmem:[#allocation3 + $0x28] sm:$0xf0] %v649
        %v654 = vld [vmem:[#allocation2 + $0x4] sm:$0xff]
        %v655 = vld [vmem:[#allocation2 + $0xc] sm:$0xf]
        %v658 = vcombine.high %v654, %v654
        %659 = vrot.lane.b32.xlu0 %v654, 113
        %v660 = vpop.permute.xlu0 %659
        %661 = vrot.lane.b32.xlu0 %v658, 113
        %v662 = vpop.permute.xlu0 %661
        %663 = vrot.lane.b32.xlu0 %v655, 113
        %v664 = vpop.permute.xlu0 %663
        %v665 = vsel %vm390, %v660, %v662
        %v666 = vsel %vm390, %v662, %v664
        %v669 = vsel %vm258, %v665, 0.0
        %v670 = vsel %vm259, %v666, 0.0
        %671 = vst [vmem:[#allocation3 + $0x30] sm:$0xf] %v669
        %672 = vst [vmem:[#allocation3 + $0x38] sm:$0xf] %v670
        %v673 = vld [vmem:[#allocation2 + $0x4] sm:$0xff]
        %v674 = vld [vmem:[#allocation2 + $0xc] sm:$0xf]
        %v677 = vcombine.low %v673, %v673
        %v678 = vcombine.low %v674, %v674
        %679 = vrot.lane.b32.xlu0 %v677, 112
        %v680 = vpop.permute.xlu0 %679
        %681 = vrot.lane.b32.xlu0 %v673, 112
        %v682 = vpop.permute.xlu0 %681
        %683 = vrot.lane.b32.xlu0 %v678, 112
        %v684 = vpop.permute.xlu0 %683
        %v685 = vsel %vm411, %v680, %v682
        %v686 = vsel %vm411, %v682, %v684
        %689 = vst [vmem:[#allocation3 + $0x30] sm:$0xf0] %v685
        %690 = vst [vmem:[#allocation3 + $0x38] sm:$0xf0] %v686
        %v691 = vld [vmem:[#allocation2 + $0x4] sm:$0xff]
        %v692 = vld [vmem:[#allocation2 + $0xc] sm:$0xf]
        %v695 = vcombine.high %v691, %v691
        %696 = vrot.lane.b32.xlu0 %v691, 111
        %v697 = vpop.permute.xlu0 %696
        %698 = vrot.lane.b32.xlu0 %v695, 111
        %v699 = vpop.permute.xlu0 %698
        %700 = vrot.lane.b32.xlu0 %v692, 111
        %v701 = vpop.permute.xlu0 %700
        %v702 = vsel %vm429, %v697, %v699
        %v703 = vsel %vm429, %v699, %v701
        %v706 = vsel %vm301, %v702, 0.0
        %v707 = vsel %vm302, %v703, 0.0
        %708 = vst [vmem:[#allocation3 + $0x40] sm:$0xf] %v706
        %709 = vst [vmem:[#allocation3 + $0x48] sm:$0xf] %v707
        %v710 = vld [vmem:[%s3] sm:$0xf]
        %v711 = vld [vmem:[#allocation3] sm:$0xff]
        %v712 = vld [vmem:[#allocation3 + $0x8] sm:$0xff]
        %v713 = vld [vmem:[#allocation3 + $0x10] sm:$0xff]
        %v714 = vld [vmem:[#allocation3 + $0x18] sm:$0xff]
        %v715 = vld [vmem:[#allocation3 + $0x20] sm:$0xff]
        %v716 = vld [vmem:[#allocation3 + $0x28] sm:$0xff]
        %v717 = vld [vmem:[#allocation3 + $0x30] sm:$0xff]
        %v718 = vld [vmem:[#allocation3 + $0x38] sm:$0xff]
        %v719 = vld [vmem:[#allocation3 + $0x40] sm:$0xf]
        %v720 = vld [vmem:[#allocation3 + $0x48] sm:$0xf]
        %v721 = vld [vmem:[%s4] sm:$0xf]
        %723 = vset.pattern.permute.xlu0 0
        %724 = vperm.xlu0 %723, %v721
        %v725 = vpop.permute.xlu0 %724
        %v728 = vsel %vm455, %v710, 0
        %v731 = vsel %vm459, %v719, 0
        %v734 = vsel %vm459, %v720, 0
        %736 = vmatprep.subr.mxu0 %v712
        %737 = vmatpush1.msra.mxu0 %v711
        %738 = vmatprep.subr.mxu0 %v714
        %739 = vmatpush1.msra.mxu0 %v713
        %740 = vmatprep.subr.mxu0 %v716
        %741 = vmatpush1.msra.mxu0 %v715
        %742 = vmatprep.subr.mxu0 %v718
        %743 = vmatpush1.msra.mxu0 %v717
        %744 = vmatprep.subr.mxu0 %v734
        %745 = vmatpush1.msra.mxu0 %v731
        %746 = vmatprep.subr.mxu0 0.0
        %747 = vmatpush1.msra.mxu0 0.0
        %748 = vmatprep.subr.mxu0 0.0
        %749 = vmatpush1.msra.mxu0 0.0
        %750 = vmatprep.subr.mxu0 0.0
        %751 = vmatpush1.msra.mxu0 0.0
        %752 = vmatprep.subr.mxu0 0.0
        %753 = vmatpush1.msra.mxu0 0.0
        %754 = vmatprep.subr.mxu0 0.0
        %755 = vmatpush1.msra.mxu0 0.0
        %756 = vmatprep.subr.mxu0 0.0
        %757 = vmatpush1.msra.mxu0 0.0
        %758 = vmatprep.subr.mxu0 0.0
        %759 = vmatpush1.msra.mxu0 0.0
        %760 = vmatprep.subr.mxu0 0.0
        %761 = vmatpush1.msra.mxu0 0.0
        %762 = vmatprep.subr.mxu0 0.0
        %763 = vmatpush1.msra.mxu0 0.0
        %764 = vmatprep.subr.mxu0 0.0
        %765 = vmatpush1.msra.mxu0 0.0
        %766 = vmatprep.subr.mxu0 0.0
        %767 = vmatpush1.msra.mxu0 0.0
        %768 = vmatprep.subr.mxu0 0.0
        %769 = vmatpush1.msra.mxu0 0.0
        %770 = vmatprep.subr.mxu0 0.0
        %771 = vmatpush1.msra.mxu0 0.0
        %772 = vmatprep.subr.mxu0 0.0
        %773 = vmatpush1.msra.mxu0 0.0
        %774 = vmatprep.subr.mxu0 0.0
        %775 = vmatpush1.msra.mxu0 0.0
        %776 = vmatprep.subr.mxu0 0.0
        %777 = vmatpush1.msra.mxu0 0.0
        %778 = vmatprep.subr.mxu0 0.0
        %779 = vmatpush1.msra.mxu0 0.0
        %780 = vmatprep.subr.mxu0 0.0
        %781 = vmatpush1.msra.mxu0 0.0
        %782 = vmatprep.subr.mxu0 0.0
        %783 = vmatpush1.msra.mxu0 0.0
        %784 = vmatprep.subr.mxu0 0.0
        %785 = vmatpush1.msra.mxu0 0.0
        %786 = vmatprep.subr.mxu0 0.0
        %787 = vmatpush1.msra.mxu0 0.0
        %788 = vmatprep.subr.mxu0 0.0
        %789 = vmatpush1.msra.mxu0 0.0
        %790 = vmatprep.subr.mxu0 0.0
        %791 = vmatpush1.msra.mxu0 0.0
        %792 = vmatprep.subr.mxu0 0.0
        %793 = vmatpush1.msra.mxu0 0.0
        %794 = vmatprep.subr.mxu0 0.0
        %795 = vmatpush1.msra.mxu0 0.0
        %796 = vmatprep.subr.mxu0 0.0
        %797 = vmatpush1.msra.mxu0 0.0
        %798 = vmatprep.subr.mxu0 0.0
        %799 = vmatpush1.msra.mxu0 0.0
        %800 = vmatprep.mubr.f32.mxu0 0.0
        %801 = vmatmul.mubr.f32.gmra.mrb[0].mxu0 %v728
        %v802 = vpop.f32.mrb[0].mxu0
        %v803 = vadd.f32 %v725, %v802
        %v804 = vpop.f32.mrb[0].mxu0
        %v805 = vadd.f32 %v725, %v804
        %806 = vdwg.mxu0
        %v809 = vcombine.low %v803, %v805
        %811 = vst [vmem:[%s240] sm:$0xff] %v809
        %s812 = sand.u32 %s140, 1
        %s813 = scalar_lea.sflag [#allocation6], %s812
        %s814 = sand.u32 %s140, 1
        %s815 = smul.addr %s814, 8
        %s816 = scalar_lea.vmem [#allocation7], %s815
        // Predicated region
        $region45: #{tpu_custom_call.1} parent=39 // pred_check
          %p817 = pneg %p150
        $region46: #{tpu_custom_call.1} parent=39 // pred_check_branch
          %819 = sbr.rel (%p817) target = $region48
        $region47: #{tpu_custom_call.1} parent=39 // pred_region
          %s821 = ssub.s32 128, 128
          %822 = vsyncadd %s813, %s821
          %s823 = smul.addr %s22, 2
          %s824 = smul.addr %s823, 64
          %s825 = scalar_lea.hbm %s5, %s824
          %s827 = sshll.u32 %s816, 4
          %s828 = int_to_ptr.vmem [resolvable:$true] %s827
          %830 = dma.vmem_to_hbm [thread:$0]  %s828, 128, %s825, %s813
        $region48: #{tpu_custom_call.1} parent=39 // pred_fallthru
          _
      $region40: #{tpu_custom_call.1} parent=5 // pred_fallthru
        _
      %p831 = scmp.le.s32.totalorder 2, %s17
      // Predicated region
      $region49: #{tpu_custom_call.1} parent=5 // pred_check
        %p832 = pneg %p831
      $region50: #{tpu_custom_call.1} parent=5 // pred_check_branch
        %834 = sbr.rel (%p832) target = $region52
      $region51: #{tpu_custom_call.1} parent=5 // pred_region
        %s835 = ssub.s32 %s17, 2
        // Predicated region
        $region53: #{tpu_custom_call.1} parent=51 // pred_check
          %p836 = pneg %p156
        $region54: #{tpu_custom_call.1} parent=51 // pred_check_branch
          %838 = sbr.rel (%p836) target = $region56
        $region55: #{tpu_custom_call.1} parent=51 // pred_region
          %s839 = sand.u32 %s141, 1
          %s840 = scalar_lea.sflag [#allocation6], %s839
          %s841 = sand.u32 %s141, 1
          %s842 = smul.addr %s841, 8
          %s843 = scalar_lea.vmem [#allocation7], %s842
          %844 = dma.done %s840, 128
        $region56: #{tpu_custom_call.1} parent=51 // pred_fallthru
          _
      $region52: #{tpu_custom_call.1} parent=5 // pred_fallthru
        _
    $region6: #{tpu_custom_call.1} parent=1 // loop_footer
      %s21 = sadd.s32 1, %s17
    $region7: #{tpu_custom_call.1} parent=1 // loop_footer_branch
      %16 = sbr.rel target = $region3
    $region8: #{tpu_custom_call.1} parent=1 // loop_exit
      _
    %845 = vsyncpa [#allocation5], 1
    %s846 = scalar_lea.sflag [#allocation5], 1
    %847 = vsyncpa %s846, 1
    %848 = vsyncpa [#allocation6], 1
    %s849 = scalar_lea.sflag [#allocation6], 1
    %850 = vsyncpa %s849, 1

</llo_original>
